<compile_context>
chip_gen: v7x
topology: tpu7x:2x2x1
jax: 0.10.0
libtpu: 0.0.40
codegen_flags: <defaults>
</compile_context>

<pallas_src>
import jax
import jax.numpy as jnp
from jax.experimental import pallas as pl
from jax.experimental.pallas import tpu as pltpu


def vae_forward_kernel(
    x_ref,        # (TB, D)   bf16  flattened input block
    w1_ref,       # (D, W)    bf16  fc1 weight (transposed)
    b1_ref,       # (1, W)    f32
    w2122_ref,    # (W, 2L)   bf16  fused fc21|fc22 weight (transposed)
    b2122_ref,    # (1, 2L)   f32
    w3_ref,       # (L, W)    bf16  fc3 weight (transposed)
    b3_ref,       # (1, W)    f32
    w4_ref,       # (W, D)    bf16  fc4 weight (transposed)
    b4_ref,       # (1, D)    f32
    eps_ref,      # (TB, L)   f32   standard-normal noise
    recon_ref,    # (TB, D)   f32   output: sigmoid(fc4(relu(fc3(z))))
    mulogvar_ref  # (TB, 2L)  f32   output: [mu | logvar] packed (lane-denser store)
):
    latent = eps_ref.shape[-1]

    # encoder: h1 = relu(fc1(x))  (bf16 operands, f32 accumulation)
    h1 = jnp.dot(x_ref[...], w1_ref[...],
                 preferred_element_type=jnp.float32) + b1_ref[...]
    h1 = jnp.maximum(h1, 0.0).astype(jnp.bfloat16)

    # fused fc21 / fc22 -> packed [mu | logvar]
    mulogvar = jnp.dot(h1, w2122_ref[...],
                       preferred_element_type=jnp.float32) + b2122_ref[...]
    mu = mulogvar[:, :latent]
    logvar = mulogvar[:, latent:]

    # reparameterize (f32): z = mu + eps * exp(0.5 * logvar)
    std = jnp.exp(0.5 * logvar)
    z = (mu + eps_ref[...] * std).astype(jnp.bfloat16)

    # decoder: h3 = relu(fc3(z)); recon = sigmoid(fc4(h3))
    h3 = jnp.dot(z, w3_ref[...],
                 preferred_element_type=jnp.float32) + b3_ref[...]
    h3 = jnp.maximum(h3, 0.0).astype(jnp.bfloat16)
    h4 = jnp.dot(h3, w4_ref[...],
                 preferred_element_type=jnp.float32) + b4_ref[...]

    recon_ref[...] = jax.nn.sigmoid(h4)
    mulogvar_ref[...] = mulogvar


def vae1c_forward(x_nchw, params, eps, *, tb=None,
                  vmem_limit_bytes=32 * 1024 * 1024):
    """x_nchw: (B, C, H, W) float32.  Returns (recon_nchw, mu, logvar) in f32."""
    B, C, H, W = x_nchw.shape
    D = C * H * W
    L = eps.shape[-1]

    # Same C-order flatten as torch .view(-1, data_numel); cast matmul operand
    # to bf16 (halves x DMA bytes, doubles MXU throughput).
    x_flat = x_nchw.reshape(B, D).astype(jnp.bfloat16)

    # bf16 weights for the MXU, f32 biases (added to f32 accumulators).
    w1 = params["w1"].astype(jnp.bfloat16)
    b1 = params["b1"].astype(jnp.float32)
    w2122 = jnp.concatenate([params["w21"], params["w22"]], axis=1).astype(jnp.bfloat16)
    b2122 = jnp.concatenate([params["b21"], params["b22"]], axis=1).astype(jnp.float32)
    w3 = params["w3"].astype(jnp.bfloat16)
    b3 = params["b3"].astype(jnp.float32)
    w4 = params["w4"].astype(jnp.bfloat16)
    b4 = params["b4"].astype(jnp.float32)
    eps_f32 = eps.astype(jnp.float32)

    VW = w1.shape[1]  # vae_width

    # Batch tile: full batch for tiny B; cap at 512 rows so double-buffered
    # x/recon tiles stay well inside v7x's 64 MiB VMEM.
    if tb is None:
        tb = B if B <= 512 else 512
    grid = (pl.cdiv(B, tb),)

    def row_block(cols):
        return pl.BlockSpec((tb, cols), lambda i: (i, 0))

    def const_block(shape):
        return pl.BlockSpec(shape, lambda i: (0, 0))

    # Advisory cost estimate for the XLA scheduler.
    flops = 2 * B * (D * VW + VW * 2 * L + L * VW + VW * D)
    transcendentals = B * (L + D)                      # exp(0.5*logvar) + sigmoid
    bytes_accessed = (
        x_flat.size * 2 + w1.size * 2 + w2122.size * 2 + w3.size * 2 + w4.size * 2
        + b1.size * 4 + b2122.size * 4 + b3.size * 4 + b4.size * 4 + eps_f32.size * 4
        + B * D * 4 + B * 2 * L * 4                    # recon + packed mu|logvar
    )

    recon_flat, mulogvar = pl.pallas_call(
        vae_forward_kernel,
        grid=grid,
        in_specs=[
            row_block(D),               # x
            const_block((D, VW)),       # w1
            const_block((1, VW)),       # b1
            const_block((VW, 2 * L)),   # w21|w22 fused
            const_block((1, 2 * L)),    # b21|b22 fused
            const_block((L, VW)),       # w3
            const_block((1, VW)),       # b3
            const_block((VW, D)),       # w4
            const_block((1, D)),        # b4
            row_block(L),               # eps
        ],
        out_specs=(
            row_block(D),               # recon (lane-dense, last dim D)
            row_block(2 * L),           # packed [mu | logvar]
        ),
        out_shape=(
            jax.ShapeDtypeStruct((B, D), jnp.float32),
            jax.ShapeDtypeStruct((B, 2 * L), jnp.float32),
        ),
        compiler_params=pltpu.CompilerParams(
            dimension_semantics=("parallel",),
            vmem_limit_bytes=vmem_limit_bytes,
        ),
        cost_estimate=pl.CostEstimate(
            flops=flops,
            transcendentals=transcendentals,
            bytes_accessed=bytes_accessed,
        ),
    )(x_flat, w1, b1, w2122, b2122, w3, b3, w4, b4, eps_f32)

    mu = mulogvar[:, :L]
    logvar = mulogvar[:, L:]
    recon = recon_flat.reshape(B, C, H, W)  # .view(-1, C, H, W)
    return recon, mu, logvar


def init_params(key, data_numel, vae_width, latent_size):
    """Deterministic init mimicking torch.nn.Linear default (uniform +-1/sqrt(fan_in)).

    Weights are stored pre-transposed as (in_features, out_features).
    """
    def linear(k, fan_in, fan_out):
        kw, kb = jax.random.split(k)
        bound = 1.0 / jnp.sqrt(fan_in)
        w = jax.random.uniform(kw, (fan_in, fan_out), jnp.float32, -bound, bound)
        b = jax.random.uniform(kb, (1, fan_out), jnp.float32, -bound, bound)
        return w, b

    k1, k2, k3, k4, k5 = jax.random.split(key, 5)
    w1, b1 = linear(k1, data_numel, vae_width)      # fc1
    w21, b21 = linear(k2, vae_width, latent_size)   # fc21
    w22, b22 = linear(k3, vae_width, latent_size)   # fc22
    w3, b3 = linear(k4, latent_size, vae_width)     # fc3
    w4, b4 = linear(k5, vae_width, data_numel)      # fc4
    return dict(w1=w1, b1=b1, w21=w21, b21=b21, w22=w22, b22=b22,
                w3=w3, b3=b3, w4=w4, b4=b4)


if __name__ == "__main__":
    # Small shapes consistent with the module's forward.
    B, C, H, W = 2, 4, 16, 16
    DATA_NUMEL = C * H * W          # 1024
    VAE_WIDTH = 32                  # opt.vae_width
    LATENT = 8                      # opt.latent_size

    key = jax.random.PRNGKey(0)
    kx, keps, kp = jax.random.split(key, 3)

    x = jax.random.normal(kx, (B, C, H, W), jnp.float32)
    eps = jax.random.normal(keps, (B, LATENT), jnp.float32)  # torch.randn_like(std)
    params = init_params(kp, DATA_NUMEL, VAE_WIDTH, LATENT)

    recon, mu, logvar = vae1c_forward(x, params, eps)
    jax.block_until_ready((recon, mu, logvar))

    assert recon.shape == (B, C, H, W)
    assert mu.shape == (B, LATENT)
    assert logvar.shape == (B, LATENT)
    assert bool(jnp.all(jnp.isfinite(recon)))
    assert bool(jnp.all(jnp.isfinite(mu)))
    assert bool(jnp.all(jnp.isfinite(logvar)))
    # recon is a sigmoid output -> must lie in (0, 1)
    assert bool(jnp.all((recon >= 0.0) & (recon <= 1.0)))

    print("KERNEL_OK")
</pallas_src>

<mosaic_0001>
module attributes {stable_mosaic.version = 11 : i64} {
  func.func @vae_forward_kernel(%arg0: i32, %arg1: memref<2x1024xbf16, #tpu.memory_space<vmem>>, %arg2: memref<1024x32xbf16, #tpu.memory_space<vmem>>, %arg3: memref<1x32xf32, #tpu.memory_space<vmem>>, %arg4: memref<32x16xbf16, #tpu.memory_space<vmem>>, %arg5: memref<1x16xf32, #tpu.memory_space<vmem>>, %arg6: memref<8x32xbf16, #tpu.memory_space<vmem>>, %arg7: memref<1x32xf32, #tpu.memory_space<vmem>>, %arg8: memref<32x1024xbf16, #tpu.memory_space<vmem>>, %arg9: memref<1x1024xf32, #tpu.memory_space<vmem>>, %arg10: memref<2x8xf32, #tpu.memory_space<vmem>>, %arg11: memref<2x1024xf32, #tpu.memory_space<vmem>>, %arg12: memref<2x16xf32, #tpu.memory_space<vmem>>) attributes {dimension_semantics = [#tpu.dimension_semantics<parallel>], iteration_bounds = array<i64: 1>, scalar_prefetch = 0 : i64, scratch_operands = 0 : i64, tpu.core_type = #tpu.core_type<tc>, window_params = [{transform_indices = @transform_0, window_bounds = array<i64: 2, 1024>}, {pipeline_mode = #tpu.pipeline_mode<synchronous>, transform_indices = @transform_1, window_bounds = array<i64: 1024, 32>}, {pipeline_mode = #tpu.pipeline_mode<synchronous>, transform_indices = @transform_2, window_bounds = array<i64: 1, 32>}, {pipeline_mode = #tpu.pipeline_mode<synchronous>, transform_indices = @transform_3, window_bounds = array<i64: 32, 16>}, {pipeline_mode = #tpu.pipeline_mode<synchronous>, transform_indices = @transform_4, window_bounds = array<i64: 1, 16>}, {pipeline_mode = #tpu.pipeline_mode<synchronous>, transform_indices = @transform_5, window_bounds = array<i64: 8, 32>}, {pipeline_mode = #tpu.pipeline_mode<synchronous>, transform_indices = @transform_6, window_bounds = array<i64: 1, 32>}, {pipeline_mode = #tpu.pipeline_mode<synchronous>, transform_indices = @transform_7, window_bounds = array<i64: 32, 1024>}, {pipeline_mode = #tpu.pipeline_mode<synchronous>, transform_indices = @transform_8, window_bounds = array<i64: 1, 1024>}, {transform_indices = @transform_9, window_bounds = array<i64: 2, 8>}, {transform_indices = @transform_10, window_bounds = array<i64: 2, 1024>}, {transform_indices = @transform_11, window_bounds = array<i64: 2, 16>}]} {
    %c0 = arith.constant 0 : index
    %c0_0 = arith.constant 0 : index
    %0 = vector.load %arg1[%c0, %c0_0] : memref<2x1024xbf16, #tpu.memory_space<vmem>>, vector<2x1024xbf16>
    %c0_1 = arith.constant 0 : index
    %c0_2 = arith.constant 0 : index
    %1 = vector.load %arg2[%c0_1, %c0_2] : memref<1024x32xbf16, #tpu.memory_space<vmem>>, vector<1024x32xbf16>
    %cst = arith.constant dense<0.000000e+00> : vector<2x32xf32>
    %2 = tpu.matmul %0, %1, %cst {dimension_numbers = #tpu.dot_dimension_numbers<[1], [0], [0], [1], [0, 0, 1, 1], [], []>} : vector<2x1024xbf16>, vector<1024x32xbf16>, vector<2x32xf32> -> vector<2x32xf32>
    %c0_3 = arith.constant 0 : index
    %c0_4 = arith.constant 0 : index
    %3 = vector.load %arg3[%c0_3, %c0_4] : memref<1x32xf32, #tpu.memory_space<vmem>>, vector<1x32xf32>
    %4 = vector.broadcast %3 : vector<1x32xf32> to vector<2x32xf32>
    %5 = arith.addf %2, %4 : vector<2x32xf32>
    %cst_5 = arith.constant 0.000000e+00 : f32
    %6 = vector.broadcast %cst_5 : f32 to vector<2x32xf32>
    %7 = arith.maximumf %5, %6 : vector<2x32xf32>
    %8 = arith.truncf %7 : vector<2x32xf32> to vector<2x32xbf16>
    %c0_6 = arith.constant 0 : index
    %c0_7 = arith.constant 0 : index
    %9 = vector.load %arg4[%c0_6, %c0_7] : memref<32x16xbf16, #tpu.memory_space<vmem>>, vector<32x16xbf16>
    %cst_8 = arith.constant dense<0.000000e+00> : vector<2x16xf32>
    %10 = tpu.matmul %8, %9, %cst_8 {dimension_numbers = #tpu.dot_dimension_numbers<[1], [0], [0], [1], [0, 0, 1, 1], [], []>} : vector<2x32xbf16>, vector<32x16xbf16>, vector<2x16xf32> -> vector<2x16xf32>
    %c0_9 = arith.constant 0 : index
    %c0_10 = arith.constant 0 : index
    %11 = vector.load %arg5[%c0_9, %c0_10] : memref<1x16xf32, #tpu.memory_space<vmem>>, vector<1x16xf32>
    %12 = vector.broadcast %11 : vector<1x16xf32> to vector<2x16xf32>
    %13 = arith.addf %10, %12 : vector<2x16xf32>
    %14 = vector.extract_strided_slice %13 {offsets = [0, 0], sizes = [2, 8], strides = [1, 1]} : vector<2x16xf32> to vector<2x8xf32>
    %15 = vector.extract_strided_slice %13 {offsets = [0, 8], sizes = [2, 8], strides = [1, 1]} : vector<2x16xf32> to vector<2x8xf32>
    %cst_11 = arith.constant 5.000000e-01 : f32
    %16 = vector.broadcast %cst_11 : f32 to vector<2x8xf32>
    %17 = arith.mulf %16, %15 : vector<2x8xf32>
    %18 = math.exp %17 : vector<2x8xf32>
    %c0_12 = arith.constant 0 : index
    %c0_13 = arith.constant 0 : index
    %19 = vector.load %arg10[%c0_12, %c0_13] : memref<2x8xf32, #tpu.memory_space<vmem>>, vector<2x8xf32>
    %20 = arith.mulf %19, %18 : vector<2x8xf32>
    %21 = arith.addf %14, %20 : vector<2x8xf32>
    %22 = arith.truncf %21 : vector<2x8xf32> to vector<2x8xbf16>
    %c0_14 = arith.constant 0 : index
    %c0_15 = arith.constant 0 : index
    %23 = vector.load %arg6[%c0_14, %c0_15] : memref<8x32xbf16, #tpu.memory_space<vmem>>, vector<8x32xbf16>
    %cst_16 = arith.constant dense<0.000000e+00> : vector<2x32xf32>
    %24 = tpu.matmul %22, %23, %cst_16 {dimension_numbers = #tpu.dot_dimension_numbers<[1], [0], [0], [1], [0, 0, 1, 1], [], []>} : vector<2x8xbf16>, vector<8x32xbf16>, vector<2x32xf32> -> vector<2x32xf32>
    %c0_17 = arith.constant 0 : index
    %c0_18 = arith.constant 0 : index
    %25 = vector.load %arg7[%c0_17, %c0_18] : memref<1x32xf32, #tpu.memory_space<vmem>>, vector<1x32xf32>
    %26 = vector.broadcast %25 : vector<1x32xf32> to vector<2x32xf32>
    %27 = arith.addf %24, %26 : vector<2x32xf32>
    %cst_19 = arith.constant 0.000000e+00 : f32
    %28 = vector.broadcast %cst_19 : f32 to vector<2x32xf32>
    %29 = arith.maximumf %27, %28 : vector<2x32xf32>
    %30 = arith.truncf %29 : vector<2x32xf32> to vector<2x32xbf16>
    %c0_20 = arith.constant 0 : index
    %c0_21 = arith.constant 0 : index
    %31 = vector.load %arg8[%c0_20, %c0_21] : memref<32x1024xbf16, #tpu.memory_space<vmem>>, vector<32x1024xbf16>
    %cst_22 = arith.constant dense<0.000000e+00> : vector<2x1024xf32>
    %32 = tpu.matmul %30, %31, %cst_22 {dimension_numbers = #tpu.dot_dimension_numbers<[1], [0], [0], [1], [0, 0, 1, 1], [], []>} : vector<2x32xbf16>, vector<32x1024xbf16>, vector<2x1024xf32> -> vector<2x1024xf32>
    %c0_23 = arith.constant 0 : index
    %c0_24 = arith.constant 0 : index
    %33 = vector.load %arg9[%c0_23, %c0_24] : memref<1x1024xf32, #tpu.memory_space<vmem>>, vector<1x1024xf32>
    %34 = vector.broadcast %33 : vector<1x1024xf32> to vector<2x1024xf32>
    %35 = arith.addf %32, %34 : vector<2x1024xf32>
    %36 = arith.negf %35 : vector<2x1024xf32>
    %37 = math.exp %36 : vector<2x1024xf32>
    %cst_25 = arith.constant 1.000000e+00 : f32
    %38 = vector.broadcast %cst_25 : f32 to vector<2x1024xf32>
    %39 = arith.addf %38, %37 : vector<2x1024xf32>
    %40 = arith.divf %38, %39 : vector<2x1024xf32>
    %c0_26 = arith.constant 0 : index
    %c0_27 = arith.constant 0 : index
    %41 = vector.load %arg11[%c0_26, %c0_27] : memref<2x1024xf32, #tpu.memory_space<vmem>>, vector<2x1024xf32>
    tpu.vector_store %arg11[%c0_26, %c0_27], %40 {strides = array<i32>} : memref<2x1024xf32, #tpu.memory_space<vmem>>, vector<2x1024xf32>,
    %c0_28 = arith.constant 0 : index
    %c0_29 = arith.constant 0 : index
    %42 = vector.load %arg12[%c0_28, %c0_29] : memref<2x16xf32, #tpu.memory_space<vmem>>, vector<2x16xf32>
    tpu.vector_store %arg12[%c0_28, %c0_29], %13 {strides = array<i32>} : memref<2x16xf32, #tpu.memory_space<vmem>>, vector<2x16xf32>,
    return
  }
  func.func @transform_0(%arg0: i32) -> (i32, i32) {
    %c0_i32 = arith.constant 0 : i32
    %c0_i32_0 = arith.constant 0 : i32
    return %arg0, %c0_i32 : i32, i32
  }
  func.func @transform_1(%arg0: i32) -> (i32, i32) {
    %c0_i32 = arith.constant 0 : i32
    %c0_i32_0 = arith.constant 0 : i32
    %c0_i32_1 = arith.constant 0 : i32
    return %c0_i32, %c0_i32_0 : i32, i32
  }
  func.func @transform_2(%arg0: i32) -> (i32, i32) {
    %c0_i32 = arith.constant 0 : i32
    %c0_i32_0 = arith.constant 0 : i32
    %c0_i32_1 = arith.constant 0 : i32
    return %c0_i32, %c0_i32_0 : i32, i32
  }
  func.func @transform_3(%arg0: i32) -> (i32, i32) {
    %c0_i32 = arith.constant 0 : i32
    %c0_i32_0 = arith.constant 0 : i32
    %c0_i32_1 = arith.constant 0 : i32
    return %c0_i32, %c0_i32_0 : i32, i32
  }
  func.func @transform_4(%arg0: i32) -> (i32, i32) {
    %c0_i32 = arith.constant 0 : i32
    %c0_i32_0 = arith.constant 0 : i32
    %c0_i32_1 = arith.constant 0 : i32
    return %c0_i32, %c0_i32_0 : i32, i32
  }
  func.func @transform_5(%arg0: i32) -> (i32, i32) {
    %c0_i32 = arith.constant 0 : i32
    %c0_i32_0 = arith.constant 0 : i32
    %c0_i32_1 = arith.constant 0 : i32
    return %c0_i32, %c0_i32_0 : i32, i32
  }
  func.func @transform_6(%arg0: i32) -> (i32, i32) {
    %c0_i32 = arith.constant 0 : i32
    %c0_i32_0 = arith.constant 0 : i32
    %c0_i32_1 = arith.constant 0 : i32
    return %c0_i32, %c0_i32_0 : i32, i32
  }
  func.func @transform_7(%arg0: i32) -> (i32, i32) {
    %c0_i32 = arith.constant 0 : i32
    %c0_i32_0 = arith.constant 0 : i32
    %c0_i32_1 = arith.constant 0 : i32
    return %c0_i32, %c0_i32_0 : i32, i32
  }
  func.func @transform_8(%arg0: i32) -> (i32, i32) {
    %c0_i32 = arith.constant 0 : i32
    %c0_i32_0 = arith.constant 0 : i32
    %c0_i32_1 = arith.constant 0 : i32
    return %c0_i32, %c0_i32_0 : i32, i32
  }
  func.func @transform_9(%arg0: i32) -> (i32, i32) {
    %c0_i32 = arith.constant 0 : i32
    %c0_i32_0 = arith.constant 0 : i32
    return %arg0, %c0_i32 : i32, i32
  }
  func.func @transform_10(%arg0: i32) -> (i32, i32) {
    %c0_i32 = arith.constant 0 : i32
    %c0_i32_0 = arith.constant 0 : i32
    return %arg0, %c0_i32 : i32, i32
  }
  func.func @transform_11(%arg0: i32) -> (i32, i32) {
    %c0_i32 = arith.constant 0 : i32
    %c0_i32_0 = arith.constant 0 : i32
    return %arg0, %c0_i32 : i32, i32
  }
}

</mosaic_0001>

<llo_original>
// kernel: tpu_custom_call.1
$region0: #{tpu_custom_call.1}
  #allocation0 [shape = 'u32[]', space=smem, size = 0x4, offset = 0x4, fixed_abs, tag = 'smem constant byte address 0x4 - core index']
  #allocation1 [shape = 'u32[144,128]{1,0:T(1,128)}', space=vmem, size = 0x12000, scoped, tag = 'internal scratch']
  %s0 = inlined_call_operand.vmem [shape: bf16[2,1024], index: 0, kind: input, shape index: {}]
  %s1 = inlined_call_operand.vmem [shape: bf16[1024,32], index: 1, kind: input, shape index: {}]
  %s2 = inlined_call_operand.vmem [shape: f32[1,32], index: 2, kind: input, shape index: {}]
  %s3 = inlined_call_operand.vmem [shape: bf16[32,16], index: 3, kind: input, shape index: {}]
  %s4 = inlined_call_operand.vmem [shape: f32[1,16], index: 4, kind: input, shape index: {}]
  %s5 = inlined_call_operand.vmem [shape: bf16[8,32], index: 5, kind: input, shape index: {}]
  %s6 = inlined_call_operand.vmem [shape: f32[1,32], index: 6, kind: input, shape index: {}]
  %s7 = inlined_call_operand.vmem [shape: bf16[32,1024], index: 7, kind: input, shape index: {}]
  %s8 = inlined_call_operand.vmem [shape: f32[1,1024], index: 8, kind: input, shape index: {}]
  %s9 = inlined_call_operand.vmem [shape: f32[2,8], index: 9, kind: input, shape index: {}]
  %s10 = inlined_call_operand.hbm [shape: f32[2,1024], index: 10, kind: output, shape index: {0}]
  %s11 = inlined_call_operand.hbm [shape: f32[2,16], index: 11, kind: output, shape index: {1}]
  %12 = xla_tuple %s10, %s11
  %s13 = sld [smem:[#allocation0]]
  $region58: #{tpu_custom_call.1} parent=0
    _
  %s15 = ssub.s32 1, %s13
  %s16 = scalar_select 0, %s15, %s13
  $region1: #{tpu_custom_call.1} parent=0
    #allocation2 [shape = 'u8[8192]{0}', space=vmem, size = 0x2000, scoped, tag = 'output window, operand 0, single buffered']
    #allocation3 [shape = 's32[1]{0}', space=sflag, size = 0x4, scoped, tag = 'scoped memory for tpu_custom_call.1']
    #allocation4 [shape = 'u8[1024]{0}', space=vmem, size = 0x400, scoped, tag = 'output window, operand 1, single buffered']
    #allocation5 [shape = 's32[1]{0}', space=sflag, size = 0x4, scoped, tag = 'scoped memory for tpu_custom_call.1']
    %17 = vsyncpa [#allocation3], 0
    %18 = vsyncpa [#allocation5], 0
    // Predicated region
    $region2: #{tpu_custom_call.1} parent=1 // pred_check
      _
    $region3: #{tpu_custom_call.1} parent=1 // pred_check_branch
      %20 = sbr.rel (0) target = $region5
    $region4: #{tpu_custom_call.1} parent=1 // pred_region
      _
    $region5: #{tpu_custom_call.1} parent=1 // pred_fallthru
      _
    // Predicated region
    $region6: #{tpu_custom_call.1} parent=1 // pred_check
      _
    $region7: #{tpu_custom_call.1} parent=1 // pred_check_branch
      %22 = sbr.rel (0) target = $region9
    $region8: #{tpu_custom_call.1} parent=1 // pred_region
      _
    $region9: #{tpu_custom_call.1} parent=1 // pred_fallthru
      _
    // Predicated region
    $region10: #{tpu_custom_call.1} parent=1 // pred_check
      _
    $region11: #{tpu_custom_call.1} parent=1 // pred_check_branch
      %24 = sbr.rel (0) target = $region13
    $region12: #{tpu_custom_call.1} parent=1 // pred_region
      _
    $region13: #{tpu_custom_call.1} parent=1 // pred_fallthru
      _
    // Predicated region
    $region14: #{tpu_custom_call.1} parent=1 // pred_check
      _
    $region15: #{tpu_custom_call.1} parent=1 // pred_check_branch
      %26 = sbr.rel (0) target = $region17
    $region16: #{tpu_custom_call.1} parent=1 // pred_region
      _
    $region17: #{tpu_custom_call.1} parent=1 // pred_fallthru
      _
    // Predicated region
    $region18: #{tpu_custom_call.1} parent=1 // pred_check
      _
    $region19: #{tpu_custom_call.1} parent=1 // pred_check_branch
      %28 = sbr.rel (0) target = $region21
    $region20: #{tpu_custom_call.1} parent=1 // pred_region
      _
    $region21: #{tpu_custom_call.1} parent=1 // pred_fallthru
      _
    // Predicated region
    $region22: #{tpu_custom_call.1} parent=1 // pred_check
      _
    $region23: #{tpu_custom_call.1} parent=1 // pred_check_branch
      %30 = sbr.rel (0) target = $region25
    $region24: #{tpu_custom_call.1} parent=1 // pred_region
      _
    $region25: #{tpu_custom_call.1} parent=1 // pred_fallthru
      _
    // Predicated region
    $region26: #{tpu_custom_call.1} parent=1 // pred_check
      _
    $region27: #{tpu_custom_call.1} parent=1 // pred_check_branch
      %32 = sbr.rel (0) target = $region29
    $region28: #{tpu_custom_call.1} parent=1 // pred_region
      _
    $region29: #{tpu_custom_call.1} parent=1 // pred_fallthru
      _
    // Predicated region
    $region30: #{tpu_custom_call.1} parent=1 // pred_check
      _
    $region31: #{tpu_custom_call.1} parent=1 // pred_check_branch
      %34 = sbr.rel (0) target = $region33
    $region32: #{tpu_custom_call.1} parent=1 // pred_region
      _
    $region33: #{tpu_custom_call.1} parent=1 // pred_fallthru
      _
    // Predicated region
    $region34: #{tpu_custom_call.1} parent=1 // pred_check
      _
    $region35: #{tpu_custom_call.1} parent=1 // pred_check_branch
      %36 = sbr.rel (0) target = $region37
    $region36: #{tpu_custom_call.1} parent=1 // pred_region
      _
    $region37: #{tpu_custom_call.1} parent=1 // pred_fallthru
      _
    // Predicated region
    $region38: #{tpu_custom_call.1} parent=1 // pred_check
      _
    $region39: #{tpu_custom_call.1} parent=1 // pred_check_branch
      %38 = sbr.rel (0) target = $region41
    $region40: #{tpu_custom_call.1} parent=1 // pred_region
      _
    $region41: #{tpu_custom_call.1} parent=1 // pred_fallthru
      _
    %v40 = vld [vmem:[%s0] sm:$0xff]
    %v41 = vld [vmem:[%s1] sm:$0xf]
    %v42 = vld [vmem:[%s1 + $0x4] sm:$0xf]
    %v43 = vld [vmem:[%s1 + $0x8] sm:$0xf]
    %v44 = vld [vmem:[%s1 + $0xc] sm:$0xf]
    %v45 = vld [vmem:[%s1 + $0x10] sm:$0xf]
    %v46 = vld [vmem:[%s1 + $0x14] sm:$0xf]
    %v47 = vld [vmem:[%s1 + $0x18] sm:$0xf]
    %v48 = vld [vmem:[%s1 + $0x1c] sm:$0xf]
    %v49 = vld [vmem:[%s1 + $0x20] sm:$0xf]
    %v50 = vld [vmem:[%s1 + $0x24] sm:$0xf]
    %v51 = vld [vmem:[%s1 + $0x28] sm:$0xf]
    %v52 = vld [vmem:[%s1 + $0x2c] sm:$0xf]
    %v53 = vld [vmem:[%s1 + $0x30] sm:$0xf]
    %v54 = vld [vmem:[%s1 + $0x34] sm:$0xf]
    %v55 = vld [vmem:[%s1 + $0x38] sm:$0xf]
    %v56 = vld [vmem:[%s1 + $0x3c] sm:$0xf]
    %v57 = vld [vmem:[%s1 + $0x40] sm:$0xf]
    %v58 = vld [vmem:[%s1 + $0x44] sm:$0xf]
    %v59 = vld [vmem:[%s1 + $0x48] sm:$0xf]
    %v60 = vld [vmem:[%s1 + $0x4c] sm:$0xf]
    %v61 = vld [vmem:[%s1 + $0x50] sm:$0xf]
    %v62 = vld [vmem:[%s1 + $0x54] sm:$0xf]
    %v63 = vld [vmem:[%s1 + $0x58] sm:$0xf]
    %v64 = vld [vmem:[%s1 + $0x5c] sm:$0xf]
    %v65 = vld [vmem:[%s1 + $0x60] sm:$0xf]
    %v66 = vld [vmem:[%s1 + $0x64] sm:$0xf]
    %v67 = vld [vmem:[%s1 + $0x68] sm:$0xf]
    %v68 = vld [vmem:[%s1 + $0x6c] sm:$0xf]
    %v69 = vld [vmem:[%s1 + $0x70] sm:$0xf]
    %v70 = vld [vmem:[%s1 + $0x74] sm:$0xf]
    %v71 = vld [vmem:[%s1 + $0x78] sm:$0xf]
    %v72 = vld [vmem:[%s1 + $0x7c] sm:$0xf]
    %v73 = vld [vmem:[%s1 + $0x80] sm:$0xf]
    %v74 = vld [vmem:[%s1 + $0x84] sm:$0xf]
    %v75 = vld [vmem:[%s1 + $0x88] sm:$0xf]
    %v76 = vld [vmem:[%s1 + $0x8c] sm:$0xf]
    %v77 = vld [vmem:[%s1 + $0x90] sm:$0xf]
    %v78 = vld [vmem:[%s1 + $0x94] sm:$0xf]
    %v79 = vld [vmem:[%s1 + $0x98] sm:$0xf]
    %v80 = vld [vmem:[%s1 + $0x9c] sm:$0xf]
    %v81 = vld [vmem:[%s1 + $0xa0] sm:$0xf]
    %v82 = vld [vmem:[%s1 + $0xa4] sm:$0xf]
    %v83 = vld [vmem:[%s1 + $0xa8] sm:$0xf]
    %v84 = vld [vmem:[%s1 + $0xac] sm:$0xf]
    %v85 = vld [vmem:[%s1 + $0xb0] sm:$0xf]
    %v86 = vld [vmem:[%s1 + $0xb4] sm:$0xf]
    %v87 = vld [vmem:[%s1 + $0xb8] sm:$0xf]
    %v88 = vld [vmem:[%s1 + $0xbc] sm:$0xf]
    %v89 = vld [vmem:[%s1 + $0xc0] sm:$0xf]
    %v90 = vld [vmem:[%s1 + $0xc4] sm:$0xf]
    %v91 = vld [vmem:[%s1 + $0xc8] sm:$0xf]
    %v92 = vld [vmem:[%s1 + $0xcc] sm:$0xf]
    %v93 = vld [vmem:[%s1 + $0xd0] sm:$0xf]
    %v94 = vld [vmem:[%s1 + $0xd4] sm:$0xf]
    %v95 = vld [vmem:[%s1 + $0xd8] sm:$0xf]
    %v96 = vld [vmem:[%s1 + $0xdc] sm:$0xf]
    %v97 = vld [vmem:[%s1 + $0xe0] sm:$0xf]
    %v98 = vld [vmem:[%s1 + $0xe4] sm:$0xf]
    %v99 = vld [vmem:[%s1 + $0xe8] sm:$0xf]
    %v100 = vld [vmem:[%s1 + $0xec] sm:$0xf]
    %v101 = vld [vmem:[%s1 + $0xf0] sm:$0xf]
    %v102 = vld [vmem:[%s1 + $0xf4] sm:$0xf]
    %v103 = vld [vmem:[%s1 + $0xf8] sm:$0xf]
    %v104 = vld [vmem:[%s1 + $0xfc] sm:$0xf]
    %v105 = vld [vmem:[%s1 + $0x100] sm:$0xf]
    %v106 = vld [vmem:[%s1 + $0x104] sm:$0xf]
    %v107 = vld [vmem:[%s1 + $0x108] sm:$0xf]
    %v108 = vld [vmem:[%s1 + $0x10c] sm:$0xf]
    %v109 = vld [vmem:[%s1 + $0x110] sm:$0xf]
    %v110 = vld [vmem:[%s1 + $0x114] sm:$0xf]
    %v111 = vld [vmem:[%s1 + $0x118] sm:$0xf]
    %v112 = vld [vmem:[%s1 + $0x11c] sm:$0xf]
    %v113 = vld [vmem:[%s1 + $0x120] sm:$0xf]
    %v114 = vld [vmem:[%s1 + $0x124] sm:$0xf]
    %v115 = vld [vmem:[%s1 + $0x128] sm:$0xf]
    %v116 = vld [vmem:[%s1 + $0x12c] sm:$0xf]
    %v117 = vld [vmem:[%s1 + $0x130] sm:$0xf]
    %v118 = vld [vmem:[%s1 + $0x134] sm:$0xf]
    %v119 = vld [vmem:[%s1 + $0x138] sm:$0xf]
    %v120 = vld [vmem:[%s1 + $0x13c] sm:$0xf]
    %v121 = vld [vmem:[%s1 + $0x140] sm:$0xf]
    %v122 = vld [vmem:[%s1 + $0x144] sm:$0xf]
    %v123 = vld [vmem:[%s1 + $0x148] sm:$0xf]
    %v124 = vld [vmem:[%s1 + $0x14c] sm:$0xf]
    %v125 = vld [vmem:[%s1 + $0x150] sm:$0xf]
    %v126 = vld [vmem:[%s1 + $0x154] sm:$0xf]
    %v127 = vld [vmem:[%s1 + $0x158] sm:$0xf]
    %v128 = vld [vmem:[%s1 + $0x15c] sm:$0xf]
    %v129 = vld [vmem:[%s1 + $0x160] sm:$0xf]
    %v130 = vld [vmem:[%s1 + $0x164] sm:$0xf]
    %v131 = vld [vmem:[%s1 + $0x168] sm:$0xf]
    %v132 = vld [vmem:[%s1 + $0x16c] sm:$0xf]
    %v133 = vld [vmem:[%s1 + $0x170] sm:$0xf]
    %v134 = vld [vmem:[%s1 + $0x174] sm:$0xf]
    %v135 = vld [vmem:[%s1 + $0x178] sm:$0xf]
    %v136 = vld [vmem:[%s1 + $0x17c] sm:$0xf]
    %v137 = vld [vmem:[%s1 + $0x180] sm:$0xf]
    %v138 = vld [vmem:[%s1 + $0x184] sm:$0xf]
    %v139 = vld [vmem:[%s1 + $0x188] sm:$0xf]
    %v140 = vld [vmem:[%s1 + $0x18c] sm:$0xf]
    %v141 = vld [vmem:[%s1 + $0x190] sm:$0xf]
    %v142 = vld [vmem:[%s1 + $0x194] sm:$0xf]
    %v143 = vld [vmem:[%s1 + $0x198] sm:$0xf]
    %v144 = vld [vmem:[%s1 + $0x19c] sm:$0xf]
    %v145 = vld [vmem:[%s1 + $0x1a0] sm:$0xf]
    %v146 = vld [vmem:[%s1 + $0x1a4] sm:$0xf]
    %v147 = vld [vmem:[%s1 + $0x1a8] sm:$0xf]
    %v148 = vld [vmem:[%s1 + $0x1ac] sm:$0xf]
    %v149 = vld [vmem:[%s1 + $0x1b0] sm:$0xf]
    %v150 = vld [vmem:[%s1 + $0x1b4] sm:$0xf]
    %v151 = vld [vmem:[%s1 + $0x1b8] sm:$0xf]
    %v152 = vld [vmem:[%s1 + $0x1bc] sm:$0xf]
    %v153 = vld [vmem:[%s1 + $0x1c0] sm:$0xf]
    %v154 = vld [vmem:[%s1 + $0x1c4] sm:$0xf]
    %v155 = vld [vmem:[%s1 + $0x1c8] sm:$0xf]
    %v156 = vld [vmem:[%s1 + $0x1cc] sm:$0xf]
    %v157 = vld [vmem:[%s1 + $0x1d0] sm:$0xf]
    %v158 = vld [vmem:[%s1 + $0x1d4] sm:$0xf]
    %v159 = vld [vmem:[%s1 + $0x1d8] sm:$0xf]
    %v160 = vld [vmem:[%s1 + $0x1dc] sm:$0xf]
    %v161 = vld [vmem:[%s1 + $0x1e0] sm:$0xf]
    %v162 = vld [vmem:[%s1 + $0x1e4] sm:$0xf]
    %v163 = vld [vmem:[%s1 + $0x1e8] sm:$0xf]
    %v164 = vld [vmem:[%s1 + $0x1ec] sm:$0xf]
    %v165 = vld [vmem:[%s1 + $0x1f0] sm:$0xf]
    %v166 = vld [vmem:[%s1 + $0x1f4] sm:$0xf]
    %v167 = vld [vmem:[%s1 + $0x1f8] sm:$0xf]
    %v168 = vld [vmem:[%s1 + $0x1fc] sm:$0xf]
    %v169 = vld [vmem:[%s2] sm:$0x1]
    %v171 = vlaneseq
    %v172 = vshrl.u32 %v171, 7
    %v173 = vsub.s32 0, %v172
    %v174 = vrot.slane %v169, %v173
    %v177 = vcombine.high %v40, %v40
    %v179 = vunpack.c.l.s4 1966171168
    %v180 = vunpack.c.0.s8 %v179
    %v181 = vlaneseq
    %v182 = vshrl.u32 %v181, 7
    %v183 = vsub.s32 %v180, %v182
    %v184 = vrot.slane %v40, %v183
    %v186 = vunpack.c.l.s4 1966171168
    %v187 = vunpack.c.0.s8 %v186
    %v188 = vlaneseq
    %v189 = vshrl.u32 %v188, 7
    %v190 = vsub.s32 %v187, %v189
    %v191 = vrot.slane %v177, %v190
    %v192 = vcombine.high %v184, %v184
    %v193 = vcombine.high %v191, %v191
    %v195 = vunpack.c.l.s4 1966171168
    %v196 = vunpack.c.0.s8 %v195
    %v197 = vlaneseq
    %v198 = vshrl.u32 %v197, 7
    %v199 = vsub.s32 %v196, %v198
    %v200 = vrot.slane %v184, %v199
    %v202 = vunpack.c.l.s4 1966171168
    %v203 = vunpack.c.0.s8 %v202
    %v204 = vlaneseq
    %v205 = vshrl.u32 %v204, 7
    %v206 = vsub.s32 %v203, %v205
    %v207 = vrot.slane %v191, %v206
    %v209 = vunpack.c.l.s4 1966171168
    %v210 = vunpack.c.0.s8 %v209
    %v211 = vlaneseq
    %v212 = vshrl.u32 %v211, 7
    %v213 = vsub.s32 %v210, %v212
    %v214 = vrot.slane %v192, %v213
    %v216 = vunpack.c.l.s4 1966171168
    %v217 = vunpack.c.0.s8 %v216
    %v218 = vlaneseq
    %v219 = vshrl.u32 %v218, 7
    %v220 = vsub.s32 %v217, %v219
    %v221 = vrot.slane %v193, %v220
    %v222 = vcombine.high %v200, %v200
    %v223 = vcombine.high %v207, %v207
    %v224 = vcombine.high %v214, %v214
    %v225 = vcombine.high %v221, %v221
    %v362 = vunpack.c.l.b16 %v41
    %v363 = vunpack.c.l.b16 %v42
    %v364 = vunpack.c.l.b16 %v43
    %v365 = vunpack.c.l.b16 %v44
    %v366 = vunpack.c.l.b16 %v45
    %v367 = vunpack.c.l.b16 %v46
    %v368 = vunpack.c.l.b16 %v47
    %v369 = vunpack.c.l.b16 %v48
    %v370 = vunpack.c.l.b16 %v49
    %v371 = vunpack.c.l.b16 %v50
    %v372 = vunpack.c.l.b16 %v51
    %v373 = vunpack.c.l.b16 %v52
    %v374 = vunpack.c.l.b16 %v53
    %v375 = vunpack.c.l.b16 %v54
    %v376 = vunpack.c.l.b16 %v55
    %v377 = vunpack.c.l.b16 %v56
    %v378 = vunpack.c.l.b16 %v57
    %v379 = vunpack.c.l.b16 %v58
    %v380 = vunpack.c.l.b16 %v59
    %v381 = vunpack.c.l.b16 %v60
    %v382 = vunpack.c.l.b16 %v61
    %v383 = vunpack.c.l.b16 %v62
    %v384 = vunpack.c.l.b16 %v63
    %v385 = vunpack.c.l.b16 %v64
    %v386 = vunpack.c.l.b16 %v65
    %v387 = vunpack.c.l.b16 %v66
    %v388 = vunpack.c.l.b16 %v67
    %v389 = vunpack.c.l.b16 %v68
    %v390 = vunpack.c.l.b16 %v69
    %v391 = vunpack.c.l.b16 %v70
    %v392 = vunpack.c.l.b16 %v71
    %v393 = vunpack.c.l.b16 %v72
    %v394 = vunpack.c.l.b16 %v73
    %v395 = vunpack.c.l.b16 %v74
    %v396 = vunpack.c.l.b16 %v75
    %v397 = vunpack.c.l.b16 %v76
    %v398 = vunpack.c.l.b16 %v77
    %v399 = vunpack.c.l.b16 %v78
    %v400 = vunpack.c.l.b16 %v79
    %v401 = vunpack.c.l.b16 %v80
    %v402 = vunpack.c.l.b16 %v81
    %v403 = vunpack.c.l.b16 %v82
    %v404 = vunpack.c.l.b16 %v83
    %v405 = vunpack.c.l.b16 %v84
    %v406 = vunpack.c.l.b16 %v85
    %v407 = vunpack.c.l.b16 %v86
    %v408 = vunpack.c.l.b16 %v87
    %v409 = vunpack.c.l.b16 %v88
    %v410 = vunpack.c.l.b16 %v89
    %v411 = vunpack.c.l.b16 %v90
    %v412 = vunpack.c.l.b16 %v91
    %v413 = vunpack.c.l.b16 %v92
    %v414 = vunpack.c.l.b16 %v93
    %v415 = vunpack.c.l.b16 %v94
    %v416 = vunpack.c.l.b16 %v95
    %v417 = vunpack.c.l.b16 %v96
    %v418 = vunpack.c.l.b16 %v97
    %v419 = vunpack.c.l.b16 %v98
    %v420 = vunpack.c.l.b16 %v99
    %v421 = vunpack.c.l.b16 %v100
    %v422 = vunpack.c.l.b16 %v101
    %v423 = vunpack.c.l.b16 %v102
    %v424 = vunpack.c.l.b16 %v103
    %v425 = vunpack.c.l.b16 %v104
    %v426 = vunpack.c.l.b16 %v105
    %v427 = vunpack.c.l.b16 %v106
    %v428 = vunpack.c.l.b16 %v107
    %v429 = vunpack.c.l.b16 %v108
    %v430 = vunpack.c.l.b16 %v109
    %v431 = vunpack.c.l.b16 %v110
    %v432 = vunpack.c.l.b16 %v111
    %v433 = vunpack.c.l.b16 %v112
    %v434 = vunpack.c.l.b16 %v113
    %v435 = vunpack.c.l.b16 %v114
    %v436 = vunpack.c.l.b16 %v115
    %v437 = vunpack.c.l.b16 %v116
    %v438 = vunpack.c.l.b16 %v117
    %v439 = vunpack.c.l.b16 %v118
    %v440 = vunpack.c.l.b16 %v119
    %v441 = vunpack.c.l.b16 %v120
    %v442 = vunpack.c.l.b16 %v121
    %v443 = vunpack.c.l.b16 %v122
    %v444 = vunpack.c.l.b16 %v123
    %v445 = vunpack.c.l.b16 %v124
    %v446 = vunpack.c.l.b16 %v125
    %v447 = vunpack.c.l.b16 %v126
    %v448 = vunpack.c.l.b16 %v127
    %v449 = vunpack.c.l.b16 %v128
    %v450 = vunpack.c.l.b16 %v129
    %v451 = vunpack.c.l.b16 %v130
    %v452 = vunpack.c.l.b16 %v131
    %v453 = vunpack.c.l.b16 %v132
    %v454 = vunpack.c.l.b16 %v133
    %v455 = vunpack.c.l.b16 %v134
    %v456 = vunpack.c.l.b16 %v135
    %v457 = vunpack.c.l.b16 %v136
    %v458 = vunpack.c.l.b16 %v137
    %v459 = vunpack.c.l.b16 %v138
    %v460 = vunpack.c.l.b16 %v139
    %v461 = vunpack.c.l.b16 %v140
    %v462 = vunpack.c.l.b16 %v141
    %v463 = vunpack.c.l.b16 %v142
    %v464 = vunpack.c.l.b16 %v143
    %v465 = vunpack.c.l.b16 %v144
    %v466 = vunpack.c.l.b16 %v145
    %v467 = vunpack.c.l.b16 %v146
    %v468 = vunpack.c.l.b16 %v147
    %v469 = vunpack.c.l.b16 %v148
    %v470 = vunpack.c.l.b16 %v149
    %v471 = vunpack.c.l.b16 %v150
    %v472 = vunpack.c.l.b16 %v151
    %v473 = vunpack.c.l.b16 %v152
    %v474 = vunpack.c.l.b16 %v153
    %v475 = vunpack.c.l.b16 %v154
    %v476 = vunpack.c.l.b16 %v155
    %v477 = vunpack.c.l.b16 %v156
    %v478 = vunpack.c.l.b16 %v157
    %v479 = vunpack.c.l.b16 %v158
    %v480 = vunpack.c.l.b16 %v159
    %v481 = vunpack.c.l.b16 %v160
    %v482 = vunpack.c.l.b16 %v161
    %v483 = vunpack.c.l.b16 %v162
    %v484 = vunpack.c.l.b16 %v163
    %v485 = vunpack.c.l.b16 %v164
    %v486 = vunpack.c.l.b16 %v165
    %v487 = vunpack.c.l.b16 %v166
    %v488 = vunpack.c.l.b16 %v167
    %v489 = vunpack.c.l.b16 %v168
    %v490 = vpack.c.b16 %v363, %v362
    %v491 = vpack.c.b16 %v365, %v364
    %v492 = vpack.c.b16 %v367, %v366
    %v493 = vpack.c.b16 %v369, %v368
    %v494 = vpack.c.b16 %v371, %v370
    %v495 = vpack.c.b16 %v373, %v372
    %v496 = vpack.c.b16 %v375, %v374
    %v497 = vpack.c.b16 %v377, %v376
    %v498 = vpack.c.b16 %v379, %v378
    %v499 = vpack.c.b16 %v381, %v380
    %v500 = vpack.c.b16 %v383, %v382
    %v501 = vpack.c.b16 %v385, %v384
    %v502 = vpack.c.b16 %v387, %v386
    %v503 = vpack.c.b16 %v389, %v388
    %v504 = vpack.c.b16 %v391, %v390
    %v505 = vpack.c.b16 %v393, %v392
    %v506 = vpack.c.b16 %v395, %v394
    %v507 = vpack.c.b16 %v397, %v396
    %v508 = vpack.c.b16 %v399, %v398
    %v509 = vpack.c.b16 %v401, %v400
    %v510 = vpack.c.b16 %v403, %v402
    %v511 = vpack.c.b16 %v405, %v404
    %v512 = vpack.c.b16 %v407, %v406
    %v513 = vpack.c.b16 %v409, %v408
    %v514 = vpack.c.b16 %v411, %v410
    %v515 = vpack.c.b16 %v413, %v412
    %v516 = vpack.c.b16 %v415, %v414
    %v517 = vpack.c.b16 %v417, %v416
    %v518 = vpack.c.b16 %v419, %v418
    %v519 = vpack.c.b16 %v421, %v420
    %v520 = vpack.c.b16 %v423, %v422
    %v521 = vpack.c.b16 %v425, %v424
    %v522 = vpack.c.b16 %v427, %v426
    %v523 = vpack.c.b16 %v429, %v428
    %v524 = vpack.c.b16 %v431, %v430
    %v525 = vpack.c.b16 %v433, %v432
    %v526 = vpack.c.b16 %v435, %v434
    %v527 = vpack.c.b16 %v437, %v436
    %v528 = vpack.c.b16 %v439, %v438
    %v529 = vpack.c.b16 %v441, %v440
    %v530 = vpack.c.b16 %v443, %v442
    %v531 = vpack.c.b16 %v445, %v444
    %v532 = vpack.c.b16 %v447, %v446
    %v533 = vpack.c.b16 %v449, %v448
    %v534 = vpack.c.b16 %v451, %v450
    %v535 = vpack.c.b16 %v453, %v452
    %v536 = vpack.c.b16 %v455, %v454
    %v537 = vpack.c.b16 %v457, %v456
    %v538 = vpack.c.b16 %v459, %v458
    %v539 = vpack.c.b16 %v461, %v460
    %v540 = vpack.c.b16 %v463, %v462
    %v541 = vpack.c.b16 %v465, %v464
    %v542 = vpack.c.b16 %v467, %v466
    %v543 = vpack.c.b16 %v469, %v468
    %v544 = vpack.c.b16 %v471, %v470
    %v545 = vpack.c.b16 %v473, %v472
    %v546 = vpack.c.b16 %v475, %v474
    %v547 = vpack.c.b16 %v477, %v476
    %v548 = vpack.c.b16 %v479, %v478
    %v549 = vpack.c.b16 %v481, %v480
    %v550 = vpack.c.b16 %v483, %v482
    %v551 = vpack.c.b16 %v485, %v484
    %v552 = vpack.c.b16 %v487, %v486
    %v553 = vpack.c.b16 %v489, %v488
    %618 = vmatprep.subr.bf16.mxu0 0
    %619 = vmatpush1.bf16.msra.mxu0 %v490
    %620 = vmatprep.subr.bf16.mxu0 0
    %621 = vmatpush1.bf16.msra.mxu0 %v491
    %622 = vmatprep.subr.bf16.mxu0 0
    %623 = vmatpush1.bf16.msra.mxu0 %v492
    %624 = vmatprep.subr.bf16.mxu0 0
    %625 = vmatpush1.bf16.msra.mxu0 %v493
    %626 = vmatprep.subr.bf16.mxu0 0
    %627 = vmatpush1.bf16.msra.mxu0 %v494
    %628 = vmatprep.subr.bf16.mxu0 0
    %629 = vmatpush1.bf16.msra.mxu0 %v495
    %630 = vmatprep.subr.bf16.mxu0 0
    %631 = vmatpush1.bf16.msra.mxu0 %v496
    %632 = vmatprep.subr.bf16.mxu0 0
    %633 = vmatpush1.bf16.msra.mxu0 %v497
    %634 = vmatprep.subr.bf16.mxu0 0
    %635 = vmatpush1.bf16.msra.mxu0 %v498
    %636 = vmatprep.subr.bf16.mxu0 0
    %637 = vmatpush1.bf16.msra.mxu0 %v499
    %638 = vmatprep.subr.bf16.mxu0 0
    %639 = vmatpush1.bf16.msra.mxu0 %v500
    %640 = vmatprep.subr.bf16.mxu0 0
    %641 = vmatpush1.bf16.msra.mxu0 %v501
    %642 = vmatprep.subr.bf16.mxu0 0
    %643 = vmatpush1.bf16.msra.mxu0 %v502
    %644 = vmatprep.subr.bf16.mxu0 0
    %645 = vmatpush1.bf16.msra.mxu0 %v503
    %646 = vmatprep.subr.bf16.mxu0 0
    %647 = vmatpush1.bf16.msra.mxu0 %v504
    %648 = vmatprep.subr.bf16.mxu0 0
    %649 = vmatpush1.bf16.msra.mxu0 %v505
    %650 = vmatprep.mubr.bf16.mxu0 %v214
    %651 = vmatmul.mubr.bf16.gmra.mrb[0].mxu0 %v200
    %v652 = vpop.f32.mrb[0].mxu0
    %v653 = vadd.f32 %v174, %v652
    %v654 = vpop.f32.mrb[0].mxu0
    %v655 = vpop.f32.mrb[0].mxu0
    %v656 = vpop.f32.mrb[0].mxu0
    %657 = vdwg.mxu0
    %658 = vmatprep.subr.bf16.mxu0 0
    %659 = vmatpush1.bf16.msra.mxu0 %v506
    %660 = vmatprep.subr.bf16.mxu0 0
    %661 = vmatpush1.bf16.msra.mxu0 %v507
    %662 = vmatprep.subr.bf16.mxu0 0
    %663 = vmatpush1.bf16.msra.mxu0 %v508
    %664 = vmatprep.subr.bf16.mxu0 0
    %665 = vmatpush1.bf16.msra.mxu0 %v509
    %666 = vmatprep.subr.bf16.mxu0 0
    %667 = vmatpush1.bf16.msra.mxu0 %v510
    %668 = vmatprep.subr.bf16.mxu0 0
    %669 = vmatpush1.bf16.msra.mxu0 %v511
    %670 = vmatprep.subr.bf16.mxu0 0
    %671 = vmatpush1.bf16.msra.mxu0 %v512
    %672 = vmatprep.subr.bf16.mxu0 0
    %673 = vmatpush1.bf16.msra.mxu0 %v513
    %674 = vmatprep.subr.bf16.mxu0 0
    %675 = vmatpush1.bf16.msra.mxu0 %v514
    %676 = vmatprep.subr.bf16.mxu0 0
    %677 = vmatpush1.bf16.msra.mxu0 %v515
    %678 = vmatprep.subr.bf16.mxu0 0
    %679 = vmatpush1.bf16.msra.mxu0 %v516
    %680 = vmatprep.subr.bf16.mxu0 0
    %681 = vmatpush1.bf16.msra.mxu0 %v517
    %682 = vmatprep.subr.bf16.mxu0 0
    %683 = vmatpush1.bf16.msra.mxu0 %v518
    %684 = vmatprep.subr.bf16.mxu0 0
    %685 = vmatpush1.bf16.msra.mxu0 %v519
    %686 = vmatprep.subr.bf16.mxu0 0
    %687 = vmatpush1.bf16.msra.mxu0 %v520
    %688 = vmatprep.subr.bf16.mxu0 0
    %689 = vmatpush1.bf16.msra.mxu0 %v521
    %690 = vmatprep.mubr.bf16.mxu0 %v224
    %691 = vmatmul.mubr.bf16.gmra.mrb[0].mxu0 %v222
    %v692 = vpop.f32.mrb[0].mxu0
    %v693 = vadd.f32 %v653, %v692
    %v694 = vpop.f32.mrb[0].mxu0
    %v695 = vpop.f32.mrb[0].mxu0
    %v696 = vpop.f32.mrb[0].mxu0
    %697 = vdwg.mxu0
    %698 = vmatprep.subr.bf16.mxu0 0
    %699 = vmatpush1.bf16.msra.mxu0 %v522
    %700 = vmatprep.subr.bf16.mxu0 0
    %701 = vmatpush1.bf16.msra.mxu0 %v523
    %702 = vmatprep.subr.bf16.mxu0 0
    %703 = vmatpush1.bf16.msra.mxu0 %v524
    %704 = vmatprep.subr.bf16.mxu0 0
    %705 = vmatpush1.bf16.msra.mxu0 %v525
    %706 = vmatprep.subr.bf16.mxu0 0
    %707 = vmatpush1.bf16.msra.mxu0 %v526
    %708 = vmatprep.subr.bf16.mxu0 0
    %709 = vmatpush1.bf16.msra.mxu0 %v527
    %710 = vmatprep.subr.bf16.mxu0 0
    %711 = vmatpush1.bf16.msra.mxu0 %v528
    %712 = vmatprep.subr.bf16.mxu0 0
    %713 = vmatpush1.bf16.msra.mxu0 %v529
    %714 = vmatprep.subr.bf16.mxu0 0
    %715 = vmatpush1.bf16.msra.mxu0 %v530
    %716 = vmatprep.subr.bf16.mxu0 0
    %717 = vmatpush1.bf16.msra.mxu0 %v531
    %718 = vmatprep.subr.bf16.mxu0 0
    %719 = vmatpush1.bf16.msra.mxu0 %v532
    %720 = vmatprep.subr.bf16.mxu0 0
    %721 = vmatpush1.bf16.msra.mxu0 %v533
    %722 = vmatprep.subr.bf16.mxu0 0
    %723 = vmatpush1.bf16.msra.mxu0 %v534
    %724 = vmatprep.subr.bf16.mxu0 0
    %725 = vmatpush1.bf16.msra.mxu0 %v535
    %726 = vmatprep.subr.bf16.mxu0 0
    %727 = vmatpush1.bf16.msra.mxu0 %v536
    %728 = vmatprep.subr.bf16.mxu0 0
    %729 = vmatpush1.bf16.msra.mxu0 %v537
    %730 = vmatprep.mubr.bf16.mxu0 %v221
    %731 = vmatmul.mubr.bf16.gmra.mrb[0].mxu0 %v207
    %v732 = vpop.f32.mrb[0].mxu0
    %v733 = vadd.f32 %v693, %v732
    %v734 = vpop.f32.mrb[0].mxu0
    %v735 = vpop.f32.mrb[0].mxu0
    %v736 = vpop.f32.mrb[0].mxu0
    %737 = vdwg.mxu0
    %738 = vmatprep.subr.bf16.mxu0 0
    %739 = vmatpush1.bf16.msra.mxu0 %v538
    %740 = vmatprep.subr.bf16.mxu0 0
    %741 = vmatpush1.bf16.msra.mxu0 %v539
    %742 = vmatprep.subr.bf16.mxu0 0
    %743 = vmatpush1.bf16.msra.mxu0 %v540
    %744 = vmatprep.subr.bf16.mxu0 0
    %745 = vmatpush1.bf16.msra.mxu0 %v541
    %746 = vmatprep.subr.bf16.mxu0 0
    %747 = vmatpush1.bf16.msra.mxu0 %v542
    %748 = vmatprep.subr.bf16.mxu0 0
    %749 = vmatpush1.bf16.msra.mxu0 %v543
    %750 = vmatprep.subr.bf16.mxu0 0
    %751 = vmatpush1.bf16.msra.mxu0 %v544
    %752 = vmatprep.subr.bf16.mxu0 0
    %753 = vmatpush1.bf16.msra.mxu0 %v545
    %754 = vmatprep.subr.bf16.mxu0 0
    %755 = vmatpush1.bf16.msra.mxu0 %v546
    %756 = vmatprep.subr.bf16.mxu0 0
    %757 = vmatpush1.bf16.msra.mxu0 %v547
    %758 = vmatprep.subr.bf16.mxu0 0
    %759 = vmatpush1.bf16.msra.mxu0 %v548
    %760 = vmatprep.subr.bf16.mxu0 0
    %761 = vmatpush1.bf16.msra.mxu0 %v549
    %762 = vmatprep.subr.bf16.mxu0 0
    %763 = vmatpush1.bf16.msra.mxu0 %v550
    %764 = vmatprep.subr.bf16.mxu0 0
    %765 = vmatpush1.bf16.msra.mxu0 %v551
    %766 = vmatprep.subr.bf16.mxu0 0
    %767 = vmatpush1.bf16.msra.mxu0 %v552
    %768 = vmatprep.subr.bf16.mxu0 0
    %769 = vmatpush1.bf16.msra.mxu0 %v553
    %770 = vmatprep.mubr.bf16.mxu0 %v225
    %771 = vmatmul.mubr.bf16.gmra.mrb[0].mxu0 %v223
    %v772 = vpop.f32.mrb[0].mxu0
    %v773 = vadd.f32 %v733, %v772
    %v774 = vpop.f32.mrb[0].mxu0
    %v775 = vpop.f32.mrb[0].mxu0
    %v776 = vpop.f32.mrb[0].mxu0
    %777 = vdwg.mxu0
    %v778 = vmax.f32 %v773, 0.0
    %v779 = vpack.c.bf16 %v778, %v778
    %v780 = vld [vmem:[%s3] sm:$0xf]
    %v781 = vld [vmem:[%s3 + $0x4] sm:$0xf]
    %v782 = vld [vmem:[%s3 + $0x8] sm:$0xf]
    %v783 = vld [vmem:[%s3 + $0xc] sm:$0xf]
    %v784 = vld [vmem:[%s4] sm:$0x1]
    %v786 = vlaneseq
    %v787 = vshrl.u32 %v786, 7
    %v788 = vsub.s32 0, %v787
    %v789 = vrot.slane %v784, %v788
    %v795 = vunpack.c.l.b16 %v780
    %v796 = vunpack.c.l.b16 %v781
    %v797 = vunpack.c.l.b16 %v782
    %v798 = vunpack.c.l.b16 %v783
    %v799 = vpack.c.b16 %v796, %v795
    %v800 = vpack.c.b16 %v798, %v797
    %vm803 = vcmask 261120
    %v805 = vsel %vm803, %v779, 0
    %807 = vmatprep.subr.bf16.mxu0 0
    %808 = vmatpush1.bf16.msra.mxu0 %v799
    %809 = vmatprep.subr.bf16.mxu0 0
    %810 = vmatpush1.bf16.msra.mxu0 %v800
    %811 = vmatprep.subr.bf16.mxu0 0
    %812 = vmatpush1.bf16.msra.mxu0 0
    %813 = vmatprep.subr.bf16.mxu0 0
    %814 = vmatpush1.bf16.msra.mxu0 0
    %815 = vmatprep.subr.bf16.mxu0 0
    %816 = vmatpush1.bf16.msra.mxu0 0
    %817 = vmatprep.subr.bf16.mxu0 0
    %818 = vmatpush1.bf16.msra.mxu0 0
    %819 = vmatprep.subr.bf16.mxu0 0
    %820 = vmatpush1.bf16.msra.mxu0 0
    %821 = vmatprep.subr.bf16.mxu0 0
    %822 = vmatpush1.bf16.msra.mxu0 0
    %823 = vmatprep.subr.bf16.mxu0 0
    %824 = vmatpush1.bf16.msra.mxu0 0
    %825 = vmatprep.subr.bf16.mxu0 0
    %826 = vmatpush1.bf16.msra.mxu0 0
    %827 = vmatprep.subr.bf16.mxu0 0
    %828 = vmatpush1.bf16.msra.mxu0 0
    %829 = vmatprep.subr.bf16.mxu0 0
    %830 = vmatpush1.bf16.msra.mxu0 0
    %831 = vmatprep.subr.bf16.mxu0 0
    %832 = vmatpush1.bf16.msra.mxu0 0
    %833 = vmatprep.subr.bf16.mxu0 0
    %834 = vmatpush1.bf16.msra.mxu0 0
    %835 = vmatprep.subr.bf16.mxu0 0
    %836 = vmatpush1.bf16.msra.mxu0 0
    %837 = vmatprep.subr.bf16.mxu0 0
    %838 = vmatpush1.bf16.msra.mxu0 0
    %839 = vmatprep.mubr.bf16.mxu0 0
    %840 = vmatmul.mubr.bf16.gmra.mrb[0].mxu0 %v805
    %v841 = vpop.f32.mrb[0].mxu0
    %v842 = vadd.f32 %v789, %v841
    %v843 = vpop.f32.mrb[0].mxu0
    %v844 = vpop.f32.mrb[0].mxu0
    %v845 = vpop.f32.mrb[0].mxu0
    %846 = vdwg.mxu0
    %v847 = vmul.f32 %v842, 0.5
    %v848 = vmul.f32 %v847, 1.442695
    %v849 = vpow.pop %v848
    %v850 = vld [vmem:[%s9] sm:$0x3]
    %852 = vrot.lane.b32.xlu0 %v849, 120
    %v853 = vpop.permute.xlu0 %852
    %v855 = vmul.f32 %v850, %v853
    %v856 = vadd.f32 %v842, %v855
    %v857 = vpack.c.bf16 %v856, %v856
    %v858 = vld [vmem:[%s5] sm:$0xf]
    %v859 = vld [vmem:[%s6] sm:$0x1]
    %v861 = vlaneseq
    %v862 = vshrl.u32 %v861, 7
    %v863 = vsub.s32 0, %v862
    %v864 = vrot.slane %v859, %v863
    %vm866 = vcmask 64512
    %v868 = vsel %vm866, %v857, 0
    %vm870 = vcmask 1043456
    %v872 = vsel %vm870, %v858, 0
    %874 = vmatprep.subr.bf16.mxu0 0
    %875 = vmatpush1.bf16.msra.mxu0 %v872
    %876 = vmatprep.subr.bf16.mxu0 0
    %877 = vmatpush1.bf16.msra.mxu0 0
    %878 = vmatprep.subr.bf16.mxu0 0
    %879 = vmatpush1.bf16.msra.mxu0 0
    %880 = vmatprep.subr.bf16.mxu0 0
    %881 = vmatpush1.bf16.msra.mxu0 0
    %882 = vmatprep.subr.bf16.mxu0 0
    %883 = vmatpush1.bf16.msra.mxu0 0
    %884 = vmatprep.subr.bf16.mxu0 0
    %885 = vmatpush1.bf16.msra.mxu0 0
    %886 = vmatprep.subr.bf16.mxu0 0
    %887 = vmatpush1.bf16.msra.mxu0 0
    %888 = vmatprep.subr.bf16.mxu0 0
    %889 = vmatpush1.bf16.msra.mxu0 0
    %890 = vmatprep.subr.bf16.mxu0 0
    %891 = vmatpush1.bf16.msra.mxu0 0
    %892 = vmatprep.subr.bf16.mxu0 0
    %893 = vmatpush1.bf16.msra.mxu0 0
    %894 = vmatprep.subr.bf16.mxu0 0
    %895 = vmatpush1.bf16.msra.mxu0 0
    %896 = vmatprep.subr.bf16.mxu0 0
    %897 = vmatpush1.bf16.msra.mxu0 0
    %898 = vmatprep.subr.bf16.mxu0 0
    %899 = vmatpush1.bf16.msra.mxu0 0
    %900 = vmatprep.subr.bf16.mxu0 0
    %901 = vmatpush1.bf16.msra.mxu0 0
    %902 = vmatprep.subr.bf16.mxu0 0
    %903 = vmatpush1.bf16.msra.mxu0 0
    %904 = vmatprep.subr.bf16.mxu0 0
    %905 = vmatpush1.bf16.msra.mxu0 0
    %906 = vmatprep.mubr.bf16.mxu0 0
    %907 = vmatmul.mubr.bf16.gmra.mrb[0].mxu0 %v868
    %v908 = vpop.f32.mrb[0].mxu0
    %v909 = vadd.f32 %v864, %v908
    %v910 = vpop.f32.mrb[0].mxu0
    %v911 = vpop.f32.mrb[0].mxu0
    %v912 = vpop.f32.mrb[0].mxu0
    %913 = vdwg.mxu0
    %v914 = vmax.f32 %v909, 0.0
    %v915 = vpack.c.bf16 %v914, %v914
    %v916 = vld [vmem:[%s7] sm:$0xff]
    %v917 = vld [vmem:[%s7 + $0x8] sm:$0xff]
    %v918 = vld [vmem:[%s7 + $0x10] sm:$0xff]
    %v919 = vld [vmem:[%s7 + $0x18] sm:$0xff]
    %v920 = vld [vmem:[%s7 + $0x20] sm:$0xff]
    %v921 = vld [vmem:[%s7 + $0x28] sm:$0xff]
    %v922 = vld [vmem:[%s7 + $0x30] sm:$0xff]
    %v923 = vld [vmem:[%s7 + $0x38] sm:$0xff]
    %v924 = vld [vmem:[%s7 + $0x40] sm:$0xff]
    %v925 = vld [vmem:[%s7 + $0x48] sm:$0xff]
    %v926 = vld [vmem:[%s7 + $0x50] sm:$0xff]
    %v927 = vld [vmem:[%s7 + $0x58] sm:$0xff]
    %v928 = vld [vmem:[%s7 + $0x60] sm:$0xff]
    %v929 = vld [vmem:[%s7 + $0x68] sm:$0xff]
    %v930 = vld [vmem:[%s7 + $0x70] sm:$0xff]
    %v931 = vld [vmem:[%s7 + $0x78] sm:$0xff]
    %v932 = vld [vmem:[%s8] sm:$0xff]
    %v934 = vlaneseq
    %v935 = vshrl.u32 %v934, 7
    %v936 = vsub.s32 0, %v935
    %v937 = vrot.slane %v932, %v936
    %v938 = vlaneseq
    %v939 = vshrl.u32 %v938, 7
    %v940 = vsub.s32 1, %v939
    %v941 = vrot.slane %v932, %v940
    %v942 = vlaneseq
    %v943 = vshrl.u32 %v942, 7
    %v944 = vsub.s32 2, %v943
    %v945 = vrot.slane %v932, %v944
    %v946 = vlaneseq
    %v947 = vshrl.u32 %v946, 7
    %v948 = vsub.s32 3, %v947
    %v949 = vrot.slane %v932, %v948
    %v950 = vlaneseq
    %v951 = vshrl.u32 %v950, 7
    %v952 = vsub.s32 4, %v951
    %v953 = vrot.slane %v932, %v952
    %v954 = vlaneseq
    %v955 = vshrl.u32 %v954, 7
    %v956 = vsub.s32 5, %v955
    %v957 = vrot.slane %v932, %v956
    %v958 = vlaneseq
    %v959 = vshrl.u32 %v958, 7
    %v960 = vsub.s32 6, %v959
    %v961 = vrot.slane %v932, %v960
    %v962 = vlaneseq
    %v963 = vshrl.u32 %v962, 7
    %v964 = vsub.s32 7, %v963
    %v965 = vrot.slane %v932, %v964
    %v990 = vunpack.c.l.b16 %v916
    %v991 = vunpack.c.h.b16 %v916
    %v992 = vunpack.c.l.b16 %v917
    %v993 = vunpack.c.h.b16 %v917
    %v994 = vunpack.c.l.b16 %v918
    %v995 = vunpack.c.h.b16 %v918
    %v996 = vunpack.c.l.b16 %v919
    %v997 = vunpack.c.h.b16 %v919
    %v998 = vunpack.c.l.b16 %v920
    %v999 = vunpack.c.h.b16 %v920
    %v1000 = vunpack.c.l.b16 %v921
    %v1001 = vunpack.c.h.b16 %v921
    %v1002 = vunpack.c.l.b16 %v922
    %v1003 = vunpack.c.h.b16 %v922
    %v1004 = vunpack.c.l.b16 %v923
    %v1005 = vunpack.c.h.b16 %v923
    %v1006 = vunpack.c.l.b16 %v924
    %v1007 = vunpack.c.h.b16 %v924
    %v1008 = vunpack.c.l.b16 %v925
    %v1009 = vunpack.c.h.b16 %v925
    %v1010 = vunpack.c.l.b16 %v926
    %v1011 = vunpack.c.h.b16 %v926
    %v1012 = vunpack.c.l.b16 %v927
    %v1013 = vunpack.c.h.b16 %v927
    %v1014 = vunpack.c.l.b16 %v928
    %v1015 = vunpack.c.h.b16 %v928
    %v1016 = vunpack.c.l.b16 %v929
    %v1017 = vunpack.c.h.b16 %v929
    %v1018 = vunpack.c.l.b16 %v930
    %v1019 = vunpack.c.h.b16 %v930
    %v1020 = vunpack.c.l.b16 %v931
    %v1021 = vunpack.c.h.b16 %v931
    %v1022 = vpack.c.b16 %v998, %v990
    %v1023 = vpack.c.b16 %v999, %v991
    %v1024 = vpack.c.b16 %v1000, %v992
    %v1025 = vpack.c.b16 %v1001, %v993
    %v1026 = vpack.c.b16 %v1002, %v994
    %v1027 = vpack.c.b16 %v1003, %v995
    %v1028 = vpack.c.b16 %v1004, %v996
    %v1029 = vpack.c.b16 %v1005, %v997
    %v1030 = vpack.c.b16 %v1014, %v1006
    %v1031 = vpack.c.b16 %v1015, %v1007
    %v1032 = vpack.c.b16 %v1016, %v1008
    %v1033 = vpack.c.b16 %v1017, %v1009
    %v1034 = vpack.c.b16 %v1018, %v1010
    %v1035 = vpack.c.b16 %v1019, %v1011
    %v1036 = vpack.c.b16 %v1020, %v1012
    %v1037 = vpack.c.b16 %v1021, %v1013
    %v1055 = vsel %vm803, %v915, 0
    %1057 = vmatprep.subr.bf16.mxu0 %v1023
    %1058 = vmatpush1.bf16.msra.mxu0 %v1022
    %1059 = vmatprep.subr.bf16.mxu0 %v1031
    %1060 = vmatpush1.bf16.msra.mxu0 %v1030
    %1061 = vmatprep.subr.bf16.mxu0 0
    %1062 = vmatpush1.bf16.msra.mxu0 0
    %1063 = vmatprep.subr.bf16.mxu0 0
    %1064 = vmatpush1.bf16.msra.mxu0 0
    %1065 = vmatprep.subr.bf16.mxu0 0
    %1066 = vmatpush1.bf16.msra.mxu0 0
    %1067 = vmatprep.subr.bf16.mxu0 0
    %1068 = vmatpush1.bf16.msra.mxu0 0
    %1069 = vmatprep.subr.bf16.mxu0 0
    %1070 = vmatpush1.bf16.msra.mxu0 0
    %1071 = vmatprep.subr.bf16.mxu0 0
    %1072 = vmatpush1.bf16.msra.mxu0 0
    %1073 = vmatprep.subr.bf16.mxu0 0
    %1074 = vmatpush1.bf16.msra.mxu0 0
    %1075 = vmatprep.subr.bf16.mxu0 0
    %1076 = vmatpush1.bf16.msra.mxu0 0
    %1077 = vmatprep.subr.bf16.mxu0 0
    %1078 = vmatpush1.bf16.msra.mxu0 0
    %1079 = vmatprep.subr.bf16.mxu0 0
    %1080 = vmatpush1.bf16.msra.mxu0 0
    %1081 = vmatprep.subr.bf16.mxu0 0
    %1082 = vmatpush1.bf16.msra.mxu0 0
    %1083 = vmatprep.subr.bf16.mxu0 0
    %1084 = vmatpush1.bf16.msra.mxu0 0
    %1085 = vmatprep.subr.bf16.mxu0 0
    %1086 = vmatpush1.bf16.msra.mxu0 0
    %1087 = vmatprep.subr.bf16.mxu0 0
    %1088 = vmatpush1.bf16.msra.mxu0 0
    %1089 = vmatprep.mubr.bf16.mxu0 0
    %1090 = vmatmul.mubr.bf16.gmra.mrb[0].mxu0 %v1055
    %v1091 = vpop.f32.mrb[0].mxu0
    %v1092 = vadd.f32 %v937, %v1091
    %v1093 = vpop.f32.mrb[0].mxu0
    %v1094 = vadd.f32 %v941, %v1093
    %v1095 = vpop.f32.mrb[0].mxu0
    %v1096 = vpop.f32.mrb[0].mxu0
    %1097 = vdwg.mxu0
    %1098 = vmatprep.subr.bf16.mxu0 %v1025
    %1099 = vmatpush1.bf16.msra.mxu0 %v1024
    %1100 = vmatprep.subr.bf16.mxu0 %v1033
    %1101 = vmatpush1.bf16.msra.mxu0 %v1032
    %1102 = vmatprep.subr.bf16.mxu0 0
    %1103 = vmatpush1.bf16.msra.mxu0 0
    %1104 = vmatprep.subr.bf16.mxu0 0
    %1105 = vmatpush1.bf16.msra.mxu0 0
    %1106 = vmatprep.subr.bf16.mxu0 0
    %1107 = vmatpush1.bf16.msra.mxu0 0
    %1108 = vmatprep.subr.bf16.mxu0 0
    %1109 = vmatpush1.bf16.msra.mxu0 0
    %1110 = vmatprep.subr.bf16.mxu0 0
    %1111 = vmatpush1.bf16.msra.mxu0 0
    %1112 = vmatprep.subr.bf16.mxu0 0
    %1113 = vmatpush1.bf16.msra.mxu0 0
    %1114 = vmatprep.subr.bf16.mxu0 0
    %1115 = vmatpush1.bf16.msra.mxu0 0
    %1116 = vmatprep.subr.bf16.mxu0 0
    %1117 = vmatpush1.bf16.msra.mxu0 0
    %1118 = vmatprep.subr.bf16.mxu0 0
    %1119 = vmatpush1.bf16.msra.mxu0 0
    %1120 = vmatprep.subr.bf16.mxu0 0
    %1121 = vmatpush1.bf16.msra.mxu0 0
    %1122 = vmatprep.subr.bf16.mxu0 0
    %1123 = vmatpush1.bf16.msra.mxu0 0
    %1124 = vmatprep.subr.bf16.mxu0 0
    %1125 = vmatpush1.bf16.msra.mxu0 0
    %1126 = vmatprep.subr.bf16.mxu0 0
    %1127 = vmatpush1.bf16.msra.mxu0 0
    %1128 = vmatprep.subr.bf16.mxu0 0
    %1129 = vmatpush1.bf16.msra.mxu0 0
    %1130 = vmatprep.mubr.bf16.mxu0 0
    %1131 = vmatmul.mubr.bf16.gmra.mrb[0].mxu0 %v1055
    %v1132 = vpop.f32.mrb[0].mxu0
    %v1133 = vadd.f32 %v945, %v1132
    %v1134 = vpop.f32.mrb[0].mxu0
    %v1135 = vadd.f32 %v949, %v1134
    %v1136 = vpop.f32.mrb[0].mxu0
    %v1137 = vpop.f32.mrb[0].mxu0
    %1138 = vdwg.mxu0
    %1139 = vmatprep.subr.bf16.mxu0 %v1027
    %1140 = vmatpush1.bf16.msra.mxu0 %v1026
    %1141 = vmatprep.subr.bf16.mxu0 %v1035
    %1142 = vmatpush1.bf16.msra.mxu0 %v1034
    %1143 = vmatprep.subr.bf16.mxu0 0
    %1144 = vmatpush1.bf16.msra.mxu0 0
    %1145 = vmatprep.subr.bf16.mxu0 0
    %1146 = vmatpush1.bf16.msra.mxu0 0
    %1147 = vmatprep.subr.bf16.mxu0 0
    %1148 = vmatpush1.bf16.msra.mxu0 0
    %1149 = vmatprep.subr.bf16.mxu0 0
    %1150 = vmatpush1.bf16.msra.mxu0 0
    %1151 = vmatprep.subr.bf16.mxu0 0
    %1152 = vmatpush1.bf16.msra.mxu0 0
    %1153 = vmatprep.subr.bf16.mxu0 0
    %1154 = vmatpush1.bf16.msra.mxu0 0
    %1155 = vmatprep.subr.bf16.mxu0 0
    %1156 = vmatpush1.bf16.msra.mxu0 0
    %1157 = vmatprep.subr.bf16.mxu0 0
    %1158 = vmatpush1.bf16.msra.mxu0 0
    %1159 = vmatprep.subr.bf16.mxu0 0
    %1160 = vmatpush1.bf16.msra.mxu0 0
    %1161 = vmatprep.subr.bf16.mxu0 0
    %1162 = vmatpush1.bf16.msra.mxu0 0
    %1163 = vmatprep.subr.bf16.mxu0 0
    %1164 = vmatpush1.bf16.msra.mxu0 0
    %1165 = vmatprep.subr.bf16.mxu0 0
    %1166 = vmatpush1.bf16.msra.mxu0 0
    %1167 = vmatprep.subr.bf16.mxu0 0
    %1168 = vmatpush1.bf16.msra.mxu0 0
    %1169 = vmatprep.subr.bf16.mxu0 0
    %1170 = vmatpush1.bf16.msra.mxu0 0
    %1171 = vmatprep.mubr.bf16.mxu0 0
    %1172 = vmatmul.mubr.bf16.gmra.mrb[0].mxu0 %v1055
    %v1173 = vpop.f32.mrb[0].mxu0
    %v1174 = vadd.f32 %v953, %v1173
    %v1175 = vpop.f32.mrb[0].mxu0
    %v1176 = vadd.f32 %v957, %v1175
    %v1177 = vpop.f32.mrb[0].mxu0
    %v1178 = vpop.f32.mrb[0].mxu0
    %1179 = vdwg.mxu0
    %1180 = vmatprep.subr.bf16.mxu0 %v1029
    %1181 = vmatpush1.bf16.msra.mxu0 %v1028
    %1182 = vmatprep.subr.bf16.mxu0 %v1037
    %1183 = vmatpush1.bf16.msra.mxu0 %v1036
    %1184 = vmatprep.subr.bf16.mxu0 0
    %1185 = vmatpush1.bf16.msra.mxu0 0
    %1186 = vmatprep.subr.bf16.mxu0 0
    %1187 = vmatpush1.bf16.msra.mxu0 0
    %1188 = vmatprep.subr.bf16.mxu0 0
    %1189 = vmatpush1.bf16.msra.mxu0 0
    %1190 = vmatprep.subr.bf16.mxu0 0
    %1191 = vmatpush1.bf16.msra.mxu0 0
    %1192 = vmatprep.subr.bf16.mxu0 0
    %1193 = vmatpush1.bf16.msra.mxu0 0
    %1194 = vmatprep.subr.bf16.mxu0 0
    %1195 = vmatpush1.bf16.msra.mxu0 0
    %1196 = vmatprep.subr.bf16.mxu0 0
    %1197 = vmatpush1.bf16.msra.mxu0 0
    %1198 = vmatprep.subr.bf16.mxu0 0
    %1199 = vmatpush1.bf16.msra.mxu0 0
    %1200 = vmatprep.subr.bf16.mxu0 0
    %1201 = vmatpush1.bf16.msra.mxu0 0
    %1202 = vmatprep.subr.bf16.mxu0 0
    %1203 = vmatpush1.bf16.msra.mxu0 0
    %1204 = vmatprep.subr.bf16.mxu0 0
    %1205 = vmatpush1.bf16.msra.mxu0 0
    %1206 = vmatprep.subr.bf16.mxu0 0
    %1207 = vmatpush1.bf16.msra.mxu0 0
    %1208 = vmatprep.subr.bf16.mxu0 0
    %1209 = vmatpush1.bf16.msra.mxu0 0
    %1210 = vmatprep.subr.bf16.mxu0 0
    %1211 = vmatpush1.bf16.msra.mxu0 0
    %1212 = vmatprep.mubr.bf16.mxu0 0
    %1213 = vmatmul.mubr.bf16.gmra.mrb[0].mxu0 %v1055
    %v1214 = vpop.f32.mrb[0].mxu0
    %v1215 = vadd.f32 %v961, %v1214
    %v1216 = vpop.f32.mrb[0].mxu0
    %v1217 = vadd.f32 %v965, %v1216
    %v1218 = vpop.f32.mrb[0].mxu0
    %v1219 = vpop.f32.mrb[0].mxu0
    %1220 = vdwg.mxu0
    %v1221 = vxor.u32 %v1092, 2147483648
    %v1222 = vxor.u32 %v1094, 2147483648
    %v1223 = vxor.u32 %v1133, 2147483648
    %v1224 = vxor.u32 %v1135, 2147483648
    %v1225 = vxor.u32 %v1174, 2147483648
    %v1226 = vxor.u32 %v1176, 2147483648
    %v1227 = vxor.u32 %v1215, 2147483648
    %v1228 = vxor.u32 %v1217, 2147483648
    %v1229 = vmul.f32 %v1221, 1.442695
    %v1230 = vpow.pop %v1229
    %v1231 = vmul.f32 %v1222, 1.442695
    %v1232 = vpow.pop %v1231
    %v1233 = vmul.f32 %v1223, 1.442695
    %v1234 = vpow.pop %v1233
    %v1235 = vmul.f32 %v1224, 1.442695
    %v1236 = vpow.pop %v1235
    %v1237 = vmul.f32 %v1225, 1.442695
    %v1238 = vpow.pop %v1237
    %v1239 = vmul.f32 %v1226, 1.442695
    %v1240 = vpow.pop %v1239
    %v1241 = vmul.f32 %v1227, 1.442695
    %v1242 = vpow.pop %v1241
    %v1243 = vmul.f32 %v1228, 1.442695
    %v1244 = vpow.pop %v1243
    %v1245 = vadd.f32 %v1230, 1.0
    %v1246 = vadd.f32 %v1232, 1.0
    %v1247 = vadd.f32 %v1234, 1.0
    %v1248 = vadd.f32 %v1236, 1.0
    %v1249 = vadd.f32 %v1238, 1.0
    %v1250 = vadd.f32 %v1240, 1.0
    %v1251 = vadd.f32 %v1242, 1.0
    %v1252 = vadd.f32 %v1244, 1.0
    %v1253 = vrcp.pop %v1245
    %v1254 = vmul.f32 1.0, %v1253
    %v1255 = vrcp.pop %v1246
    %v1256 = vmul.f32 1.0, %v1255
    %v1257 = vrcp.pop %v1247
    %v1258 = vmul.f32 1.0, %v1257
    %v1259 = vrcp.pop %v1248
    %v1260 = vmul.f32 1.0, %v1259
    %v1261 = vrcp.pop %v1249
    %v1262 = vmul.f32 1.0, %v1261
    %v1263 = vrcp.pop %v1250
    %v1264 = vmul.f32 1.0, %v1263
    %v1265 = vrcp.pop %v1251
    %v1266 = vmul.f32 1.0, %v1265
    %v1267 = vrcp.pop %v1252
    %v1268 = vmul.f32 1.0, %v1267
    %v1277 = vcombine.low %v1254, %v1256
    %v1278 = vcombine.low %v1258, %v1260
    %v1280 = vunpack.c.l.s4 1983009808
    %v1281 = vunpack.c.0.s8 %v1280
    %v1282 = vlaneseq
    %v1283 = vshrl.u32 %v1282, 7
    %v1284 = vsub.s32 %v1281, %v1283
    %v1285 = vrot.slane %v1277, %v1284
    %v1287 = vunpack.c.l.s4 1983009808
    %v1288 = vunpack.c.0.s8 %v1287
    %v1289 = vlaneseq
    %v1290 = vshrl.u32 %v1289, 7
    %v1291 = vsub.s32 %v1288, %v1290
    %v1292 = vrot.slane %v1278, %v1291
    %v1293 = vcombine.low %v1285, %v1292
    %v1294 = vcombine.low %v1262, %v1264
    %v1295 = vcombine.low %v1266, %v1268
    %v1297 = vunpack.c.l.s4 1983009808
    %v1298 = vunpack.c.0.s8 %v1297
    %v1299 = vlaneseq
    %v1300 = vshrl.u32 %v1299, 7
    %v1301 = vsub.s32 %v1298, %v1300
    %v1302 = vrot.slane %v1294, %v1301
    %v1304 = vunpack.c.l.s4 1983009808
    %v1305 = vunpack.c.0.s8 %v1304
    %v1306 = vlaneseq
    %v1307 = vshrl.u32 %v1306, 7
    %v1308 = vsub.s32 %v1305, %v1307
    %v1309 = vrot.slane %v1295, %v1308
    %v1310 = vcombine.low %v1302, %v1309
    %1313 = vst [vmem:[#allocation2] sm:$0xff] %v1293
    %1314 = vst [vmem:[#allocation2 + $0x8] sm:$0xff] %v1310
    %vm1315 = vcmask 123904
    %1316 = vst.msk [vmem:[#allocation4] sm:$0x3] %vm1315, %v842
    // Predicated region
    $region42: #{tpu_custom_call.1} parent=1 // pred_check
      _
    $region43: #{tpu_custom_call.1} parent=1 // pred_check_branch
      %1318 = sbr.rel (0) target = $region45
    $region44: #{tpu_custom_call.1} parent=1 // pred_region
      %s1320 = ssub.s32 256, 256
      %1321 = vsyncadd [#allocation3], %s1320
      %s1323 = sshll.u32 [#allocation2], 4
      %s1324 = int_to_ptr.vmem [resolvable:$true] %s1323
      %1326 = dma.vmem_to_hbm [thread:$0]  %s1324, 256, %s10, [#allocation3]
    $region45: #{tpu_custom_call.1} parent=1 // pred_fallthru
      _
    // Predicated region
    $region46: #{tpu_custom_call.1} parent=1 // pred_check
      _
    $region47: #{tpu_custom_call.1} parent=1 // pred_check_branch
      %1328 = sbr.rel (0) target = $region49
    $region48: #{tpu_custom_call.1} parent=1 // pred_region
      %s1330 = ssub.s32 32, 32
      %1331 = vsyncadd [#allocation5], %s1330
      %s1333 = sshll.u32 [#allocation4], 4
      %s1334 = int_to_ptr.vmem [resolvable:$true] %s1333
      %1336 = dma.vmem_to_hbm [thread:$0]  %s1334, 32, %s11, [#allocation5]
    $region49: #{tpu_custom_call.1} parent=1 // pred_fallthru
      _
    // Predicated region
    $region50: #{tpu_custom_call.1} parent=1 // pred_check
      _
    $region51: #{tpu_custom_call.1} parent=1 // pred_check_branch
      %1338 = sbr.rel (0) target = $region53
    $region52: #{tpu_custom_call.1} parent=1 // pred_region
      %1339 = dma.done [#allocation3], 256
    $region53: #{tpu_custom_call.1} parent=1 // pred_fallthru
      _
    // Predicated region
    $region54: #{tpu_custom_call.1} parent=1 // pred_check
      _
    $region55: #{tpu_custom_call.1} parent=1 // pred_check_branch
      %1341 = sbr.rel (0) target = $region57
    $region56: #{tpu_custom_call.1} parent=1 // pred_region
      %1342 = dma.done [#allocation5], 32
    $region57: #{tpu_custom_call.1} parent=1 // pred_fallthru
      _
    %1343 = vsyncpa [#allocation3], 1
    %1344 = vsyncpa [#allocation5], 1

</llo_original>
